<compile_context>
chip_gen: v5e
topology: v5e:2x2
jax: 0.10.0
libtpu: 0.0.40
codegen_flags: <defaults>
</compile_context>

<pallas_src>
import functools

import jax
import jax.numpy as jnp
from jax.experimental import pallas as pl
from jax.experimental.pallas import tpu as pltpu


def _fusion_kernel(*refs, num_branches, chunk, num_chunks):
    """refs = (x_0,...,x_{B-1}, w1, b1, w2, b2, out).

    x_b : VMEM [C, TP]             branch features, pixels in lanes
    w1  : VMEM [B, hid_pad, C]     conv1 weight, split per branch (f32)
    b1  : VMEM [hid_pad, 1]        conv1 bias column (f32)
    w2  : VMEM [b_pad, hid_pad]    conv2 weight, zero-padded (f32)
    b2  : VMEM [b_pad, 1]          conv2 bias column, zero-padded (f32)
    out : VMEM [C, TP]
    """
    x_refs = refs[:num_branches]
    w1_ref, b1_ref, w2_ref, b2_ref, o_ref = refs[num_branches:]

    def compute_chunk(ci):
        if isinstance(ci, int):
            p0 = ci * chunk
        else:
            p0 = pl.multiple_of(ci * chunk, chunk)
        sl = pl.ds(p0, chunk)

        # conv1 (1x1, C*B -> hid)  ==  sum_b W1[b] @ X_b on the MXU.
        # Chained sum of dots -> Mosaic/MRB can accumulate in place (v7x).
        # Branch chunks are fed in their native dtype; f32 accumulation.
        h = jnp.dot(w1_ref[0], x_refs[0][:, sl],
                    preferred_element_type=jnp.float32)
        for b in range(1, num_branches):
            h = h + jnp.dot(w1_ref[b], x_refs[b][:, sl],
                            preferred_element_type=jnp.float32)
        # + bias, ReLU  (padded rows of h stay exactly 0)
        h = jnp.maximum(h + b1_ref[...], 0.0)            # [hid_pad, chunk]

        # conv2 (hid -> B) + bias as ONE small MXU dot; padded rows unused.
        logits = jnp.dot(w2_ref[...], h,
                         preferred_element_type=jnp.float32) + b2_ref[...]
        wts = jax.nn.sigmoid(logits)                     # [b_pad, chunk]

        # Sigmoid-weighted sum of branches; re-read each branch chunk from
        # VMEM (short live range) and accumulate in f32.
        out = wts[0:1, :] * x_refs[0][:, sl].astype(jnp.float32)
        for j in range(1, num_branches):
            out = out + wts[j:j + 1, :] * x_refs[j][:, sl].astype(jnp.float32)
        o_ref[:, sl] = out.astype(o_ref.dtype)

    if num_chunks == 1:
        compute_chunk(0)
    else:
        # fori_loop bounds live ranges; unroll only short trip-counts.
        def body(ci, carry):
            compute_chunk(ci)
            return carry
        jax.lax.fori_loop(0, num_chunks, body, 0, unroll=(num_chunks <= 8))


def _nearest_resize_nchw(f, out_h, out_w):
    # Matches F.interpolate(mode='nearest'): src = floor(dst * in / out).
    _, _, H, W = f.shape
    if (H, W) == (out_h, out_w):
        return f
    hi = (jnp.arange(out_h) * H) // out_h
    wi = (jnp.arange(out_w) * W) // out_w
    return f[:, :, hi[:, None], wi[None, :]]


def _vmem_capacity_bytes():
    try:
        info = pltpu.get_tpu_info()
        return int(getattr(info, "vmem_capacity_bytes", 64 << 20))
    except Exception:
        return 64 << 20  # conservative (v7x-sized) fallback


def dynamic_feature_fusion(branch_outputs, w1, b1, w2, b2):
    """branch_outputs: list of NCHW arrays [N, C, Hi, Wi] (same N, C)."""
    num_branches = len(branch_outputs)
    N, C = branch_outputs[0].shape[:2]
    hid = w1.shape[0]                                  # C // 8
    dtype = branch_outputs[0].dtype
    itemsize = jnp.dtype(dtype).itemsize
    min_h = min(int(f.shape[2]) for f in branch_outputs)
    min_w = min(int(f.shape[3]) for f in branch_outputs)
    P = min_h * min_w

    # Nearest-neighbor resize (pure index gather; no-op for min-size branches),
    # then flatten pixels LAST: each branch -> [N, C, P]; no concat/transpose.
    # TODO(synk): fold the resize gather into the kernel DMA via a
    # scalar-prefetched pixel-index table to avoid the extra HBM round trip
    # for resized branches.
    xs = [_nearest_resize_nchw(f, min_h, min_w).reshape(N, C, P)
          for f in branch_outputs]

    # Lane-dense store path for tiny feature maps: fold the batch into the
    # pixel axis so the last dim presented to the store is >= 128 lanes.
    flatten_batch = (P < 128) and (N > 1)
    if flatten_batch:
        xs = [jnp.transpose(x, (1, 0, 2)).reshape(1, C, N * P) for x in xs]
        NB, Ptot = 1, N * P
    else:
        NB, Ptot = N, P

    # conv1 weight [hid, C*B, 1, 1] -> per-branch [B, hid_pad, C]; pad hid to a
    # multiple of 8 sublanes (padded rows are zero and unused downstream).
    hid_pad = max(8, -(-hid // 8) * 8)
    b_pad = max(8, -(-num_branches // 8) * 8)
    w1_b = jnp.transpose(w1.reshape(hid, num_branches, C),
                         (1, 0, 2)).astype(jnp.float32)
    w1_b = jnp.pad(w1_b, ((0, 0), (0, hid_pad - hid), (0, 0)))
    b1_c = jnp.pad(b1.reshape(hid, 1).astype(jnp.float32),
                   ((0, hid_pad - hid), (0, 0)))
    # conv2 params as a small zero-padded matrix + bias column (VMEM, MXU dot).
    w2_p = jnp.pad(w2.reshape(num_branches, hid).astype(jnp.float32),
                   ((0, b_pad - num_branches), (0, hid_pad - hid)))
    b2_c = jnp.pad(b2.reshape(num_branches, 1).astype(jnp.float32),
                   ((0, b_pad - num_branches), (0, 0)))

    # Pixel tiling: generation-aware VMEM budget for the double-buffered
    # in+out blocks (<= ~24 MiB keeps v7x's 64 MiB/TC safe; big win vs 12 MiB
    # on v6e/v5e).  Applied unconditionally.
    vmem_cap = _vmem_capacity_bytes()
    budget = max(8 << 20, min(vmem_cap // 4, 24 << 20))
    bytes_per_pixel = (num_branches + 1) * C * itemsize   # B inputs + 1 output
    CHUNK = 512                                           # in-kernel lane chunk
    if Ptot <= CHUNK:
        tile_p = Ptot            # full-dim block (no 128-alignment needed)
        chunk = Ptot
    else:
        tile_cap = budget // (2 * bytes_per_pixel)        # double-buffered
        tile_p = max(CHUNK, (min(Ptot, tile_cap) // CHUNK) * CHUNK)
        chunk = CHUNK
    num_chunks = tile_p // chunk
    grid = (NB, pl.cdiv(Ptot, tile_p))

    params_bytes = 4 * (w1_b.size + b1_c.size + w2_p.size + b2_c.size)
    needed = 2 * bytes_per_pixel * tile_p + 2 * params_bytes + (4 << 20)
    vmem_limit = int(min(vmem_cap // 2, max(32 << 20, needed)))

    branch_spec = pl.BlockSpec((None, C, tile_p), lambda n, i: (n, 0, i))
    in_specs = [branch_spec] * num_branches + [
        pl.BlockSpec((num_branches, hid_pad, C), lambda n, i: (0, 0, 0)),
        pl.BlockSpec((hid_pad, 1), lambda n, i: (0, 0)),
        pl.BlockSpec((b_pad, hid_pad), lambda n, i: (0, 0)),
        pl.BlockSpec((b_pad, 1), lambda n, i: (0, 0)),
    ]

    kernel = functools.partial(_fusion_kernel, num_branches=num_branches,
                               chunk=chunk, num_chunks=num_chunks)

    out = pl.pallas_call(
        kernel,
        out_shape=jax.ShapeDtypeStruct((NB, C, Ptot), dtype),
        grid_spec=pltpu.PrefetchScalarGridSpec(
            num_scalar_prefetch=0,
            grid=grid,
            in_specs=in_specs,
            out_specs=pl.BlockSpec((None, C, tile_p), lambda n, i: (n, 0, i)),
        ),
        compiler_params=pltpu.CompilerParams(
            dimension_semantics=("parallel", "parallel"),
            vmem_limit_bytes=vmem_limit),
    )(*xs, w1_b, b1_c, w2_p, b2_c)

    if flatten_batch:
        out = jnp.transpose(out.reshape(C, N, P), (1, 0, 2))
    return out.reshape(N, C, min_h, min_w)              # free reshape, NCHW


def _reference(branch_outputs, w1, b1, w2, b2):
    """Pure-JAX reference of the PyTorch forward (for verification)."""
    num_branches = len(branch_outputs)
    _, C = branch_outputs[0].shape[:2]
    hid = w1.shape[0]
    min_h = min(int(f.shape[2]) for f in branch_outputs)
    min_w = min(int(f.shape[3]) for f in branch_outputs)
    resized = [_nearest_resize_nchw(f, min_h, min_w) for f in branch_outputs]
    stacked = jnp.concatenate(resized, axis=1).astype(jnp.float32)   # [N,C*B,h,w]
    h = jnp.einsum('oc,nchw->nohw', w1.reshape(hid, C * num_branches),
                   stacked) + b1.reshape(1, hid, 1, 1)
    h = jnp.maximum(h, 0.0)
    logits = jnp.einsum('oc,nchw->nohw', w2.reshape(num_branches, hid),
                        h) + b2.reshape(1, num_branches, 1, 1)
    wts = jax.nn.sigmoid(logits)                                      # [N,B,h,w]
    return sum(wts[:, b:b + 1] * resized[b] for b in range(num_branches))


if __name__ == "__main__":
    key = jax.random.PRNGKey(0)
    k1, k2, k3, k4, k5, k6 = jax.random.split(key, 6)

    N, C, B = 2, 16, 2          # in_channels=16, num_branches=2  (C // 8 = 2)
    hid = C // 8

    # Branches at different spatial sizes to exercise the nearest resize.
    branch0 = jax.random.normal(k1, (N, C, 16, 16), dtype=jnp.float32)
    branch1 = jax.random.normal(k2, (N, C, 8, 8), dtype=jnp.float32)
    branches = [branch0, branch1]

    # Deterministic "attention" parameters (Conv2d 1x1 weights/biases).
    w1 = 0.1 * jax.random.normal(k3, (hid, C * B, 1, 1), dtype=jnp.float32)
    b1 = 0.1 * jax.random.normal(k4, (hid,), dtype=jnp.float32)
    w2 = 0.1 * jax.random.normal(k5, (B, hid, 1, 1), dtype=jnp.float32)
    b2 = 0.1 * jax.random.normal(k6, (B,), dtype=jnp.float32)

    out = jax.block_until_ready(dynamic_feature_fusion(branches, w1, b1, w2, b2))
    ref = jax.block_until_ready(_reference(branches, w1, b1, w2, b2))

    assert out.shape == (N, C, 8, 8), out.shape
    err = float(jnp.max(jnp.abs(out - ref)))
    assert err < 1e-4, err
    print("KERNEL_OK")
</pallas_src>

<mosaic_0001>
module attributes {stable_mosaic.version = 11 : i64} {
  func.func @_fusion_kernel(%arg0: i32, %arg1: i32, %arg2: memref<1x16x128xf32, #tpu.memory_space<vmem>>, %arg3: memref<1x16x128xf32, #tpu.memory_space<vmem>>, %arg4: memref<2x8x16xf32, #tpu.memory_space<vmem>>, %arg5: memref<8x1xf32, #tpu.memory_space<vmem>>, %arg6: memref<8x8xf32, #tpu.memory_space<vmem>>, %arg7: memref<8x1xf32, #tpu.memory_space<vmem>>, %arg8: memref<1x16x128xf32, #tpu.memory_space<vmem>>) attributes {dimension_semantics = [#tpu.dimension_semantics<parallel>, #tpu.dimension_semantics<parallel>], iteration_bounds = array<i64: 1, 1>, scalar_prefetch = 0 : i64, scratch_operands = 0 : i64, tpu.core_type = #tpu.core_type<tc>, window_params = [{transform_indices = @transform_0, window_bounds = array<i64: 1, 16, 128>}, {transform_indices = @transform_1, window_bounds = array<i64: 1, 16, 128>}, {pipeline_mode = #tpu.pipeline_mode<synchronous>, transform_indices = @transform_2, window_bounds = array<i64: 2, 8, 16>}, {pipeline_mode = #tpu.pipeline_mode<synchronous>, transform_indices = @transform_3, window_bounds = array<i64: 8, 1>}, {pipeline_mode = #tpu.pipeline_mode<synchronous>, transform_indices = @transform_4, window_bounds = array<i64: 8, 8>}, {pipeline_mode = #tpu.pipeline_mode<synchronous>, transform_indices = @transform_5, window_bounds = array<i64: 8, 1>}, {transform_indices = @transform_6, window_bounds = array<i64: 1, 16, 128>}]} {
    %c0 = arith.constant 0 : index
    %c0_0 = arith.constant 0 : index
    %c0_1 = arith.constant 0 : index
    %0 = vector.load %arg4[%c0, %c0_0, %c0_1] : memref<2x8x16xf32, #tpu.memory_space<vmem>>, vector<1x8x16xf32>
    %1 = vector.shape_cast %0 : vector<1x8x16xf32> to vector<8x16xf32>
    %c0_2 = arith.constant 0 : index
    %c0_3 = arith.constant 0 : index
    %c0_4 = arith.constant 0 : index
    %2 = vector.load %arg2[%c0_2, %c0_3, %c0_4] : memref<1x16x128xf32, #tpu.memory_space<vmem>>, vector<1x16x128xf32>
    %3 = vector.shape_cast %2 : vector<1x16x128xf32> to vector<16x128xf32>
    %cst = arith.constant dense<0.000000e+00> : vector<8x128xf32>
    %4 = tpu.matmul %1, %3, %cst {dimension_numbers = #tpu.dot_dimension_numbers<[1], [0], [0], [1], [0, 0, 1, 1], [], []>} : vector<8x16xf32>, vector<16x128xf32>, vector<8x128xf32> -> vector<8x128xf32>
    %c1 = arith.constant 1 : index
    %c0_5 = arith.constant 0 : index
    %c0_6 = arith.constant 0 : index
    %5 = vector.load %arg4[%c1, %c0_5, %c0_6] : memref<2x8x16xf32, #tpu.memory_space<vmem>>, vector<1x8x16xf32>
    %6 = vector.shape_cast %5 : vector<1x8x16xf32> to vector<8x16xf32>
    %c0_7 = arith.constant 0 : index
    %c0_8 = arith.constant 0 : index
    %c0_9 = arith.constant 0 : index
    %7 = vector.load %arg3[%c0_7, %c0_8, %c0_9] : memref<1x16x128xf32, #tpu.memory_space<vmem>>, vector<1x16x128xf32>
    %8 = vector.shape_cast %7 : vector<1x16x128xf32> to vector<16x128xf32>
    %cst_10 = arith.constant dense<0.000000e+00> : vector<8x128xf32>
    %9 = tpu.matmul %6, %8, %cst_10 {dimension_numbers = #tpu.dot_dimension_numbers<[1], [0], [0], [1], [0, 0, 1, 1], [], []>} : vector<8x16xf32>, vector<16x128xf32>, vector<8x128xf32> -> vector<8x128xf32>
    %10 = arith.addf %4, %9 : vector<8x128xf32>
    %c0_11 = arith.constant 0 : index
    %c0_12 = arith.constant 0 : index
    %11 = vector.load %arg5[%c0_11, %c0_12] : memref<8x1xf32, #tpu.memory_space<vmem>>, vector<8x1xf32>
    %12 = vector.broadcast %11 : vector<8x1xf32> to vector<8x128xf32>
    %13 = arith.addf %10, %12 : vector<8x128xf32>
    %cst_13 = arith.constant 0.000000e+00 : f32
    %14 = vector.broadcast %cst_13 : f32 to vector<8x128xf32>
    %15 = arith.maximumf %13, %14 : vector<8x128xf32>
    %c0_14 = arith.constant 0 : index
    %c0_15 = arith.constant 0 : index
    %16 = vector.load %arg6[%c0_14, %c0_15] : memref<8x8xf32, #tpu.memory_space<vmem>>, vector<8x8xf32>
    %cst_16 = arith.constant dense<0.000000e+00> : vector<8x128xf32>
    %17 = tpu.matmul %16, %15, %cst_16 {dimension_numbers = #tpu.dot_dimension_numbers<[1], [0], [0], [1], [0, 0, 1, 1], [], []>} : vector<8x8xf32>, vector<8x128xf32>, vector<8x128xf32> -> vector<8x128xf32>
    %c0_17 = arith.constant 0 : index
    %c0_18 = arith.constant 0 : index
    %18 = vector.load %arg7[%c0_17, %c0_18] : memref<8x1xf32, #tpu.memory_space<vmem>>, vector<8x1xf32>
    %19 = vector.broadcast %18 : vector<8x1xf32> to vector<8x128xf32>
    %20 = arith.addf %17, %19 : vector<8x128xf32>
    %21 = arith.negf %20 : vector<8x128xf32>
    %22 = math.exp %21 : vector<8x128xf32>
    %cst_19 = arith.constant 1.000000e+00 : f32
    %23 = vector.broadcast %cst_19 : f32 to vector<8x128xf32>
    %24 = arith.addf %23, %22 : vector<8x128xf32>
    %25 = arith.divf %23, %24 : vector<8x128xf32>
    %26 = vector.extract_strided_slice %25 {offsets = [0, 0], sizes = [1, 128], strides = [1, 1]} : vector<8x128xf32> to vector<1x128xf32>
    %c0_20 = arith.constant 0 : index
    %c0_21 = arith.constant 0 : index
    %c0_22 = arith.constant 0 : index
    %27 = vector.load %arg2[%c0_20, %c0_21, %c0_22] : memref<1x16x128xf32, #tpu.memory_space<vmem>>, vector<1x16x128xf32>
    %28 = vector.shape_cast %27 : vector<1x16x128xf32> to vector<16x128xf32>
    %29 = vector.broadcast %26 : vector<1x128xf32> to vector<16x128xf32>
    %30 = arith.mulf %29, %28 : vector<16x128xf32>
    %31 = vector.extract_strided_slice %25 {offsets = [1, 0], sizes = [1, 128], strides = [1, 1]} : vector<8x128xf32> to vector<1x128xf32>
    %c0_23 = arith.constant 0 : index
    %c0_24 = arith.constant 0 : index
    %c0_25 = arith.constant 0 : index
    %32 = vector.load %arg3[%c0_23, %c0_24, %c0_25] : memref<1x16x128xf32, #tpu.memory_space<vmem>>, vector<1x16x128xf32>
    %33 = vector.shape_cast %32 : vector<1x16x128xf32> to vector<16x128xf32>
    %34 = vector.broadcast %31 : vector<1x128xf32> to vector<16x128xf32>
    %35 = arith.mulf %34, %33 : vector<16x128xf32>
    %36 = arith.addf %30, %35 : vector<16x128xf32>
    %c0_26 = arith.constant 0 : index
    %c0_27 = arith.constant 0 : index
    %c0_28 = arith.constant 0 : index
    %37 = vector.load %arg8[%c0_26, %c0_27, %c0_28] : memref<1x16x128xf32, #tpu.memory_space<vmem>>, vector<1x16x128xf32>
    %38 = vector.shape_cast %37 : vector<1x16x128xf32> to vector<16x128xf32>
    %39 = vector.shape_cast %36 : vector<16x128xf32> to vector<1x16x128xf32>
    tpu.vector_store %arg8[%c0_26, %c0_27, %c0_28], %39 {strides = array<i32>} : memref<1x16x128xf32, #tpu.memory_space<vmem>>, vector<1x16x128xf32>,
    return
  }
  func.func @transform_0(%arg0: i32, %arg1: i32) -> (i32, i32, i32) {
    %c0_i32 = arith.constant 0 : i32
    %c0_i32_0 = arith.constant 0 : i32
    return %arg0, %c0_i32, %arg1 : i32, i32, i32
  }
  func.func @transform_1(%arg0: i32, %arg1: i32) -> (i32, i32, i32) {
    %c0_i32 = arith.constant 0 : i32
    %c0_i32_0 = arith.constant 0 : i32
    return %arg0, %c0_i32, %arg1 : i32, i32, i32
  }
  func.func @transform_2(%arg0: i32, %arg1: i32) -> (i32, i32, i32) {
    %c0_i32 = arith.constant 0 : i32
    %c0_i32_0 = arith.constant 0 : i32
    %c0_i32_1 = arith.constant 0 : i32
    %c0_i32_2 = arith.constant 0 : i32
    return %c0_i32, %c0_i32_0, %c0_i32_1 : i32, i32, i32
  }
  func.func @transform_3(%arg0: i32, %arg1: i32) -> (i32, i32) {
    %c0_i32 = arith.constant 0 : i32
    %c0_i32_0 = arith.constant 0 : i32
    %c0_i32_1 = arith.constant 0 : i32
    return %c0_i32, %c0_i32_0 : i32, i32
  }
  func.func @transform_4(%arg0: i32, %arg1: i32) -> (i32, i32) {
    %c0_i32 = arith.constant 0 : i32
    %c0_i32_0 = arith.constant 0 : i32
    %c0_i32_1 = arith.constant 0 : i32
    return %c0_i32, %c0_i32_0 : i32, i32
  }
  func.func @transform_5(%arg0: i32, %arg1: i32) -> (i32, i32) {
    %c0_i32 = arith.constant 0 : i32
    %c0_i32_0 = arith.constant 0 : i32
    %c0_i32_1 = arith.constant 0 : i32
    return %c0_i32, %c0_i32_0 : i32, i32
  }
  func.func @transform_6(%arg0: i32, %arg1: i32) -> (i32, i32, i32) {
    %c0_i32 = arith.constant 0 : i32
    %c0_i32_0 = arith.constant 0 : i32
    return %arg0, %c0_i32, %arg1 : i32, i32, i32
  }
}

</mosaic_0001>

<llo_original>
// kernel: tpu_custom_call.1
$region0: #{tpu_custom_call.1}
  #allocation0 [shape = 'u32[]', space=smem, size = 0x4, offset = 0x4, fixed_abs, tag = 'smem constant byte address 0x4 - core index']
  #allocation1 [shape = 'u32[72,128]{1,0:T(1,128)}', space=vmem, size = 0x9000, scoped, tag = 'internal scratch']
  %s0 = inlined_call_operand.vmem [shape: f32[1,16,128], index: 0, kind: input, shape index: {}]
  %s1 = inlined_call_operand.hbm [shape: f32[1,16,128], index: 1, kind: input, shape index: {}]
  %s2 = inlined_call_operand.hbm [shape: f32[2,8,16], index: 2, kind: input, shape index: {}]
  %s3 = inlined_call_operand.vmem [shape: f32[8,1], index: 3, kind: input, shape index: {}]
  %s4 = inlined_call_operand.hbm [shape: f32[8,8], index: 4, kind: input, shape index: {}]
  %s5 = inlined_call_operand.vmem [shape: f32[8,1], index: 5, kind: input, shape index: {}]
  %s6 = inlined_call_operand.hbm [shape: f32[1,16,128], index: 6, kind: output, shape index: {}]
  %s7 = sld [smem:[#allocation0]]
  $region46: #{tpu_custom_call.1} parent=0
    _
  %s9 = ssub.s32 1, %s7
  %s10 = scalar_select 0, %s9, %s7
  $region1: #{tpu_custom_call.1} parent=0
    #allocation2 [shape = 'u8[8192]{0}', space=vmem, size = 0x2000, scoped, tag = 'input window, operand 1, single buffered']
    #allocation3 [shape = 's32[1]{0}', space=sflag, size = 0x4, scoped, tag = 'scoped memory for tpu_custom_call.1']
    #allocation4 [shape = 's32[1]{0}', space=sflag, size = 0x4, scoped, tag = 'scoped memory for tpu_custom_call.1']
    #allocation5 [shape = 'u8[8192]{0}', space=vmem, size = 0x2000, scoped, tag = 'input window, operand 2, single buffered']
    #allocation6 [shape = 's32[1]{0}', space=sflag, size = 0x4, scoped, tag = 'scoped memory for tpu_custom_call.1']
    #allocation7 [shape = 'u8[4096]{0}', space=vmem, size = 0x1000, scoped, tag = 'input window, operand 4, single buffered']
    #allocation8 [shape = 'u8[8192]{0}', space=vmem, size = 0x2000, scoped, tag = 'output window, operand 0, single buffered']
    %11 = vsyncpa [#allocation3], 0
    %12 = vsyncpa [#allocation6], 0
    %13 = vsyncpa [#allocation4], 0
    // Predicated region
    $region2: #{tpu_custom_call.1} parent=1 // pred_check
      _
    $region3: #{tpu_custom_call.1} parent=1 // pred_check_branch
      %15 = sbr.rel (0) target = $region5
    $region4: #{tpu_custom_call.1} parent=1 // pred_region
      _
    $region5: #{tpu_custom_call.1} parent=1 // pred_fallthru
      _
    // Predicated region
    $region6: #{tpu_custom_call.1} parent=1 // pred_check
      _
    $region7: #{tpu_custom_call.1} parent=1 // pred_check_branch
      %17 = sbr.rel (0) target = $region9
    $region8: #{tpu_custom_call.1} parent=1 // pred_region
      %19 = vsyncadd [#allocation3], 0
      %s20 = sshll.u32 %s1, 4
      %s21 = int_to_ptr.hbm [resolvable:$true] %s20
      %s22 = sshll.u32 [#allocation2], 4
      %s23 = int_to_ptr.vmem [resolvable:$true] %s22
      %28 = dma.hbm_to_vmem [thread:$0]  %s21, 256, %s23, [#allocation3], 128, 128, 8
    $region9: #{tpu_custom_call.1} parent=1 // pred_fallthru
      _
    // Predicated region
    $region10: #{tpu_custom_call.1} parent=1 // pred_check
      _
    $region11: #{tpu_custom_call.1} parent=1 // pred_check_branch
      %30 = sbr.rel (0) target = $region13
    $region12: #{tpu_custom_call.1} parent=1 // pred_region
      %32 = vsyncadd [#allocation6], 0
      %s33 = sshll.u32 %s2, 4
      %s34 = int_to_ptr.hbm [resolvable:$true] %s33
      %s35 = sshll.u32 [#allocation5], 4
      %s36 = int_to_ptr.vmem [resolvable:$true] %s35
      %41 = dma.hbm_to_vmem [thread:$0]  %s34, 256, %s36, [#allocation6], 128, 128, 8
    $region13: #{tpu_custom_call.1} parent=1 // pred_fallthru
      _
    // Predicated region
    $region14: #{tpu_custom_call.1} parent=1 // pred_check
      _
    $region15: #{tpu_custom_call.1} parent=1 // pred_check_branch
      %43 = sbr.rel (0) target = $region17
    $region16: #{tpu_custom_call.1} parent=1 // pred_region
      _
    $region17: #{tpu_custom_call.1} parent=1 // pred_fallthru
      _
    // Predicated region
    $region18: #{tpu_custom_call.1} parent=1 // pred_check
      _
    $region19: #{tpu_custom_call.1} parent=1 // pred_check_branch
      %45 = sbr.rel (0) target = $region21
    $region20: #{tpu_custom_call.1} parent=1 // pred_region
      %47 = vsyncadd [#allocation6], 0
      %s49 = sshll.u32 %s4, 4
      %s50 = int_to_ptr.hbm [resolvable:$true] %s49
      %s51 = sshll.u32 [#allocation7], 4
      %s52 = int_to_ptr.vmem [resolvable:$true] %s51
      %54 = dma.hbm_to_vmem [thread:$0]  %s50, 128, %s52, [#allocation6]
    $region21: #{tpu_custom_call.1} parent=1 // pred_fallthru
      _
    // Predicated region
    $region22: #{tpu_custom_call.1} parent=1 // pred_check
      _
    $region23: #{tpu_custom_call.1} parent=1 // pred_check_branch
      %56 = sbr.rel (0) target = $region25
    $region24: #{tpu_custom_call.1} parent=1 // pred_region
      _
    $region25: #{tpu_custom_call.1} parent=1 // pred_fallthru
      _
    // Predicated region
    $region26: #{tpu_custom_call.1} parent=1 // pred_check
      _
    $region27: #{tpu_custom_call.1} parent=1 // pred_check_branch
      %58 = sbr.rel (0) target = $region29
    $region28: #{tpu_custom_call.1} parent=1 // pred_region
      %60 = dma.done [#allocation3], 256
    $region29: #{tpu_custom_call.1} parent=1 // pred_fallthru
      _
    // Predicated region
    $region30: #{tpu_custom_call.1} parent=1 // pred_check
      _
    $region31: #{tpu_custom_call.1} parent=1 // pred_check_branch
      %62 = sbr.rel (0) target = $region33
    $region32: #{tpu_custom_call.1} parent=1 // pred_region
      %64 = dma.done [#allocation6], 256
    $region33: #{tpu_custom_call.1} parent=1 // pred_fallthru
      _
    // Predicated region
    $region34: #{tpu_custom_call.1} parent=1 // pred_check
      _
    $region35: #{tpu_custom_call.1} parent=1 // pred_check_branch
      %66 = sbr.rel (0) target = $region37
    $region36: #{tpu_custom_call.1} parent=1 // pred_region
      %68 = dma.done [#allocation6], 128
    $region37: #{tpu_custom_call.1} parent=1 // pred_fallthru
      _
    %v69 = vld [vmem:[#allocation5] sm:$0xff]
    %v70 = vld [vmem:[%s0] sm:$0xff]
    %v71 = vld [vmem:[%s0 + $0x8] sm:$0xff]
    %s72 = scalar_lea.vmem [#allocation5], 8
    %v73 = vld [vmem:[%s72] sm:$0xff]
    %v74 = vld [vmem:[#allocation2] sm:$0xff]
    %v75 = vld [vmem:[#allocation2 + $0x8] sm:$0xff]
    %vm76 = vcmask 130048
    %v78 = vsel %vm76, %v73, 0
    %80 = vmatpush.msra.mxu0 0.0
    %81 = vmatpush.msra.mxu0 0.0
    %82 = vmatpush.msra.mxu0 0.0
    %83 = vmatpush.msra.mxu0 0.0
    %84 = vmatpush.msra.mxu0 0.0
    %85 = vmatpush.msra.mxu0 0.0
    %86 = vmatpush.msra.mxu0 0.0
    %87 = vmatpush.msra.mxu0 0.0
    %88 = vmatpush.msra.mxu0 0.0
    %89 = vmatpush.msra.mxu0 0.0
    %90 = vmatpush.msra.mxu0 0.0
    %91 = vmatpush.msra.mxu0 0.0
    %92 = vmatpush.msra.mxu0 0.0
    %93 = vmatpush.msra.mxu0 0.0
    %94 = vmatpush.msra.mxu0 %v75
    %95 = vmatpush.msra.mxu0 %v74
    %96 = vmatmul.f32.gmra.mxu0 %v78
    %v97 = vpop.f32.mrf.mxu0
    %v98 = vadd.f32 0.0, %v97
    %99 = vdwg.mxu0
    %v101 = vsel %vm76, %v69, 0
    %103 = vmatpush.msra.mxu0 0.0
    %104 = vmatpush.msra.mxu0 0.0
    %105 = vmatpush.msra.mxu0 0.0
    %106 = vmatpush.msra.mxu0 0.0
    %107 = vmatpush.msra.mxu0 0.0
    %108 = vmatpush.msra.mxu0 0.0
    %109 = vmatpush.msra.mxu0 0.0
    %110 = vmatpush.msra.mxu0 0.0
    %111 = vmatpush.msra.mxu0 0.0
    %112 = vmatpush.msra.mxu0 0.0
    %113 = vmatpush.msra.mxu0 0.0
    %114 = vmatpush.msra.mxu0 0.0
    %115 = vmatpush.msra.mxu0 0.0
    %116 = vmatpush.msra.mxu0 0.0
    %117 = vmatpush.msra.mxu0 %v71
    %118 = vmatpush.msra.mxu0 %v70
    %119 = vmatmul.f32.gmra.mxu0 %v101
    %v120 = vpop.f32.mrf.mxu0
    %v121 = vadd.f32 %v98, %v120
    %122 = vdwg.mxu0
    %v123 = vld [vmem:[%s3] sm:$0xff]
    %125 = vset.pattern.permute.xlu0 0
    %126 = vperm.xlu0 %125, %v123
    %v127 = vpop.permute.xlu0 %126
    %v129 = vadd.f32 %v121, %v127
    %v130 = vmax.f32 %v129, 0.0
    %v131 = vld [vmem:[#allocation7] sm:$0xff]
    %v132 = vld [vmem:[%s5] sm:$0xff]
    %134 = vset.pattern.permute.xlu0 0
    %135 = vperm.xlu0 %134, %v132
    %v136 = vpop.permute.xlu0 %135
    %vm138 = vcmask 64512
    %v140 = vsel %vm138, %v131, 0
    %142 = vmatpush.msra.mxu0 0.0
    %143 = vmatpush.msra.mxu0 0.0
    %144 = vmatpush.msra.mxu0 0.0
    %145 = vmatpush.msra.mxu0 0.0
    %146 = vmatpush.msra.mxu0 0.0
    %147 = vmatpush.msra.mxu0 0.0
    %148 = vmatpush.msra.mxu0 0.0
    %149 = vmatpush.msra.mxu0 0.0
    %150 = vmatpush.msra.mxu0 0.0
    %151 = vmatpush.msra.mxu0 0.0
    %152 = vmatpush.msra.mxu0 0.0
    %153 = vmatpush.msra.mxu0 0.0
    %154 = vmatpush.msra.mxu0 0.0
    %155 = vmatpush.msra.mxu0 0.0
    %156 = vmatpush.msra.mxu0 0.0
    %157 = vmatpush.msra.mxu0 %v130
    %158 = vmatmul.f32.gmra.mxu0 %v140
    %v159 = vpop.f32.mrf.mxu0
    %v160 = vadd.f32 %v136, %v159
    %161 = vdwg.mxu0
    %v162 = vxor.u32 %v160, 2147483648
    %v163 = vmul.f32 %v162, 1.442695
    %v164 = vpow.pop %v163
    %v165 = vadd.f32 %v164, 1.0
    %v166 = vrcp.pop %v165
    %v167 = vmul.f32 %v165, %v166
    %v168 = vsub.f32 1.0, %v167
    %v169 = vmul.f32 %v166, %v168
    %v170 = vadd.f32 %v166, %v169
    %vm171 = vweird.f32 %v165
    %vm172 = vweird.f32 %v166
    %vm173 = vmor %vm171, %vm172
    %v174 = vsel %vm173, %v166, %v170
    %v175 = vand.u32 2147483647, %v165
    %vm176 = vcmp.eq.f32.partialorder %v175, 8.507059e+37
    %v177 = vand.u32 %v165, 2147483648
    %v178 = vor.u32 1.1754944e-38, %v177
    %v179 = vsel %vm176, %v178, %v174
    %v180 = vmul.f32 1.0, %v179
    %v181 = vperm.slane %v180, 0
    %v182 = vmul.f32 %v181, %v70
    %v183 = vmul.f32 %v181, %v71
    %v184 = vperm.slane %v180, 1
    %v185 = vmul.f32 %v184, %v74
    %v186 = vmul.f32 %v184, %v75
    %v187 = vadd.f32 %v182, %v185
    %v188 = vadd.f32 %v183, %v186
    %189 = vst [vmem:[#allocation8] sm:$0xff] %v187
    %190 = vst [vmem:[#allocation8 + $0x8] sm:$0xff] %v188
    // Predicated region
    $region38: #{tpu_custom_call.1} parent=1 // pred_check
      _
    $region39: #{tpu_custom_call.1} parent=1 // pred_check_branch
      %192 = sbr.rel (0) target = $region41
    $region40: #{tpu_custom_call.1} parent=1 // pred_region
      %194 = vsyncadd [#allocation4], 0
      %s195 = sshll.u32 [#allocation8], 4
      %s196 = int_to_ptr.vmem [resolvable:$true] %s195
      %s197 = sshll.u32 %s6, 4
      %s198 = int_to_ptr.hbm [resolvable:$true] %s197
      %203 = dma.vmem_to_hbm [thread:$0]  %s196, 256, %s198, [#allocation4], 128, 128, 8
    $region41: #{tpu_custom_call.1} parent=1 // pred_fallthru
      _
    // Predicated region
    $region42: #{tpu_custom_call.1} parent=1 // pred_check
      _
    $region43: #{tpu_custom_call.1} parent=1 // pred_check_branch
      %205 = sbr.rel (0) target = $region45
    $region44: #{tpu_custom_call.1} parent=1 // pred_region
      %207 = dma.done [#allocation4], 256
    $region45: #{tpu_custom_call.1} parent=1 // pred_fallthru
      _
    %208 = vsyncpa [#allocation3], 1
    %209 = vsyncpa [#allocation6], 1
    %210 = vsyncpa [#allocation4], 1

</llo_original>
